<compile_context>
chip_gen: v5e
topology: v5e:2x2
jax: 0.10.0
libtpu: 0.0.40
codegen_flags: <defaults>
</compile_context>

<pallas_src>
import functools

import jax
import jax.numpy as jnp
from jax import lax
from jax.experimental import pallas as pl
from jax.experimental.pallas import tpu as pltpu


# ---------------------------------------------------------------------------
# Chip-aware budgets
# ---------------------------------------------------------------------------
def _cdiv(a: int, b: int) -> int:
    return -(-a // b)


def _query_vmem_budget() -> int:
    try:
        cap = int(pltpu.get_tpu_info().vmem_capacity_bytes)
    except Exception:  # noqa: BLE001 - conservative fallback if query unavailable
        cap = 64 * 1024 * 1024
    # Scoped / pipelined budget: stay well below physical VMEM (v7x only has 64 MiB/TC).
    return max(24 * 1024 * 1024, min(96 * 1024 * 1024, (cap * 3) // 8))


_VMEM_BUDGET = _query_vmem_budget()                     # ~48 MiB v5e/v6e, ~24 MiB v7x
_DEFAULT_BLOCK_BYTES = max(1 << 20, min(8 << 20, _VMEM_BUDGET // 6))
_FUSED_MAX_BYTES = max(512 * 1024, min(2 << 20, _VMEM_BUDGET // 12))


# ---------------------------------------------------------------------------
# Block / tile selection (byte-budget driven, ragged-safe)
# ---------------------------------------------------------------------------
def _pick_blocks(rows: int, cols: int, itemsize: int, block_bytes: int):
    """Choose (row_block, rows_padded, col_block, cols_padded) for a (rows, cols) view.

    Blocks target ~block_bytes of input data.  Row block is a multiple of 8 (or the
    full extent); column block is a multiple of 128 (or the full extent).  If no
    suitable divisor exists the axis is padded (stats mask the padded tail).
    """
    # --- rows (sublane axis) ---
    row_cap = max(8, min(1024, block_bytes // (128 * itemsize)))
    if rows <= row_cap:
        rblk, rows_p = rows, rows                       # full extent: always legal
    else:
        rblk, rows_p = 0, rows
        for cand in range((min(row_cap, rows) // 8) * 8, 7, -8):
            if rows % cand == 0:
                rblk = cand
                break
        if rblk == 0:                                   # no divisor -> pad rows
            rows_p = _cdiv(rows, 8) * 8
            rblk = 8
            for cand in range((row_cap // 8) * 8, 7, -8):
                if rows_p % cand == 0:
                    rblk = cand
                    break
    # --- columns (lane axis) ---
    col_budget = max(128, (block_bytes // max(rblk * itemsize, 1)) // 128 * 128)
    if cols <= col_budget:
        cblk, cols_p = cols, cols                       # full extent: always legal
    else:
        cblk, cols_p = 0, cols
        for cand in range(col_budget, 127, -128):
            if cols % cand == 0:
                cblk = cand
                break
        if cblk == 0:                                   # ragged -> pad + mask tail
            cblk = col_budget
            cols_p = _cdiv(cols, cblk) * cblk
    return rblk, rows_p, cblk, cols_p


def _pad2d(x2, rows_p, cols_p):
    r, c = x2.shape
    if rows_p == r and cols_p == c:
        return x2
    return jnp.pad(x2, ((0, rows_p - r), (0, cols_p - c)))


# ---------------------------------------------------------------------------
# Kernels
# ---------------------------------------------------------------------------
def _make_stats_kernel(cols_actual: int, tile: int, ragged: bool):
    """Per-row streaming (mean, M2) with Chan's parallel combine across column blocks.

    x_ref : (rblk, tile) block of the (rows_p, cols_p) view at grid point (i, j).
    mean_ref / m2_ref : (rblk, 1) resident accumulators (same block across j).
    """

    def kernel(x_ref, mean_ref, m2_ref):
        j = pl.program_id(1)
        x = x_ref[...].astype(jnp.float32)                           # (rblk, tile)

        if ragged:
            col0 = j * tile
            lane = col0 + lax.broadcasted_iota(jnp.int32, x.shape, 1)
            valid = lane < cols_actual
            nb = jnp.minimum(tile, cols_actual - col0).astype(jnp.float32)
            mean_b = jnp.sum(jnp.where(valid, x, 0.0), axis=-1, keepdims=True) / nb
            d = jnp.where(valid, x - mean_b, 0.0)
            m2_b = jnp.sum(d * d, axis=-1, keepdims=True)
        else:
            nb = float(tile)
            mean_b = jnp.sum(x, axis=-1, keepdims=True) * (1.0 / tile)
            d = x - mean_b
            m2_b = jnp.sum(d * d, axis=-1, keepdims=True)

        @pl.when(j == 0)
        def _():
            mean_ref[...] = mean_b
            m2_ref[...] = m2_b

        @pl.when(j > 0)
        def _():
            # All earlier column blocks are full, so the running count is exactly
            # j * tile (int); only the combine ratios are formed in f32.
            n_prev = (j * tile).astype(jnp.float32)
            n_new = n_prev + nb
            ratio = nb / n_new
            delta = mean_b - mean_ref[...]
            mean_ref[...] = mean_ref[...] + delta * ratio
            m2_ref[...] = m2_ref[...] + m2_b + delta * delta * (n_prev * ratio)

    return kernel


def _norm_kernel(x_ref, scale_ref, bias_ref, o_ref):
    """y = x * scale + bias, with per-row scale = 1/(sqrt(var)+1e-8), bias = -mean*scale."""
    x = x_ref[...].astype(jnp.float32)
    o_ref[...] = (x * scale_ref[...] + bias_ref[...]).astype(o_ref.dtype)


def _make_fused_kernel(B: int, C: int, HW: int):
    """Single-pass fit + normalize for VMEM-resident inputs (training n==0 path)."""
    n_total = B * HW
    inv_n = 1.0 / n_total

    def kernel(x_ref, o_ref, mean_ref, var_ref):
        x = x_ref[...].astype(jnp.float32)                           # (B, C, HW)
        mean3 = jnp.sum(jnp.sum(x, axis=-1, keepdims=True),
                        axis=0, keepdims=True) * inv_n               # (1, C, 1)
        d = x - mean3
        m23 = jnp.sum(jnp.sum(d * d, axis=-1, keepdims=True),
                      axis=0, keepdims=True)                         # (1, C, 1)
        var3 = m23 / (n_total - 1.0)                                 # unbiased
        scale3 = 1.0 / (jnp.sqrt(var3) + 1e-8)
        o_ref[...] = (d * scale3).astype(o_ref.dtype)
        mean_ref[...] = mean3
        var_ref[...] = var3

    return kernel


# ---------------------------------------------------------------------------
# pallas_call wrappers
# ---------------------------------------------------------------------------
def _row_stats_pallas(x2p, rblk, rows_p, cblk, cols_p, cols_actual):
    """Per-row (mean, M2) over the first `cols_actual` columns of the padded view."""
    nrb, ncb = rows_p // rblk, cols_p // cblk
    ragged = cols_p != cols_actual
    itemsize = x2p.dtype.itemsize
    cost = pl.CostEstimate(
        flops=int(3 * rows_p * cols_p),
        transcendentals=0,
        bytes_accessed=int(rows_p * cols_p * itemsize + 2 * rows_p * 4))
    return pl.pallas_call(
        _make_stats_kernel(cols_actual, cblk, ragged),
        out_shape=(jax.ShapeDtypeStruct((rows_p, 1), jnp.float32),
                   jax.ShapeDtypeStruct((rows_p, 1), jnp.float32)),
        grid=(nrb, ncb),
        in_specs=[pl.BlockSpec((rblk, cblk), lambda i, j: (i, j))],
        out_specs=(pl.BlockSpec((rblk, 1), lambda i, j: (i, 0)),
                   pl.BlockSpec((rblk, 1), lambda i, j: (i, 0))),
        compiler_params=pltpu.CompilerParams(
            dimension_semantics=("parallel", "arbitrary"),
            vmem_limit_bytes=_VMEM_BUDGET),
        cost_estimate=cost,
    )(x2p)


def _normalize_pallas(x2p, scale_r, bias_r, rblk, cblk):
    rows_p, cols_p = x2p.shape
    nrb, ncb = rows_p // rblk, cols_p // cblk
    itemsize = x2p.dtype.itemsize
    cost = pl.CostEstimate(
        flops=int(2 * rows_p * cols_p),
        transcendentals=0,
        bytes_accessed=int(2 * rows_p * cols_p * itemsize + 2 * rows_p * 4))
    return pl.pallas_call(
        _norm_kernel,
        out_shape=jax.ShapeDtypeStruct((rows_p, cols_p), x2p.dtype),
        grid=(nrb, ncb),
        in_specs=[pl.BlockSpec((rblk, cblk), lambda i, j: (i, j)),
                  pl.BlockSpec((rblk, 1), lambda i, j: (i, 0)),
                  pl.BlockSpec((rblk, 1), lambda i, j: (i, 0))],
        out_specs=pl.BlockSpec((rblk, cblk), lambda i, j: (i, j)),
        compiler_params=pltpu.CompilerParams(
            dimension_semantics=("parallel", "parallel"),
            vmem_limit_bytes=_VMEM_BUDGET),
        cost_estimate=cost,
    )(x2p, scale_r, bias_r)


def _fused_fit_norm_pallas(x3):
    B, C, HW = x3.shape
    itemsize = x3.dtype.itemsize
    cost = pl.CostEstimate(
        flops=int(7 * B * C * HW),
        transcendentals=int(C),
        bytes_accessed=int(2 * B * C * HW * itemsize + 2 * C * 4))
    out3, mean_c, var_c = pl.pallas_call(
        _make_fused_kernel(B, C, HW),
        out_shape=(jax.ShapeDtypeStruct((B, C, HW), x3.dtype),
                   jax.ShapeDtypeStruct((1, C, 1), jnp.float32),
                   jax.ShapeDtypeStruct((1, C, 1), jnp.float32)),
        grid=(1,),
        in_specs=[pl.BlockSpec((B, C, HW), lambda i: (0, 0, 0))],
        out_specs=(pl.BlockSpec((B, C, HW), lambda i: (0, 0, 0)),
                   pl.BlockSpec((1, C, 1), lambda i: (0, 0, 0)),
                   pl.BlockSpec((1, C, 1), lambda i: (0, 0, 0))),
        compiler_params=pltpu.CompilerParams(
            dimension_semantics=("arbitrary",),
            vmem_limit_bytes=_VMEM_BUDGET),
        cost_estimate=cost,
    )(x3)
    return out3, mean_c.reshape(C), var_c.reshape(C)


# ---------------------------------------------------------------------------
# jitted forward branches
# ---------------------------------------------------------------------------
def _scale_bias_rows(mean_c, var_c, B, rows_p):
    C = mean_c.shape[0]
    scale_c = 1.0 / (jnp.sqrt(var_c) + 1e-8)
    bias_c = -mean_c * scale_c
    scale_r = jnp.broadcast_to(scale_c[None, :], (B, C)).reshape(B * C, 1)
    bias_r = jnp.broadcast_to(bias_c[None, :], (B, C)).reshape(B * C, 1)
    pad = rows_p - B * C
    if pad:
        scale_r = jnp.pad(scale_r, ((0, pad), (0, 0)))
        bias_r = jnp.pad(bias_r, ((0, pad), (0, 0)))
    return scale_r, bias_r


def _normalize_with(x2p, mean_c, var_c, rblk, cblk, B, C, HW, R):
    rows_p = x2p.shape[0]
    scale_r, bias_r = _scale_bias_rows(mean_c, var_c, B, rows_p)
    out2p = _normalize_pallas(x2p, scale_r, bias_r, rblk, cblk)
    return out2p[:R, :HW].reshape(B, C, HW)


def _combine_row_partials(mean_r, m2_r, B, C, HW):
    """Exact Chan combine of equal-count per-row partials over the batch axis."""
    R = B * C
    mean_bc = mean_r[:R, 0].reshape(B, C)
    m2_bc = m2_r[:R, 0].reshape(B, C)
    mean_c = jnp.mean(mean_bc, axis=0)
    m2_c = jnp.sum(m2_bc, axis=0) + HW * jnp.sum((mean_bc - mean_c) ** 2, axis=0)
    return mean_c, m2_c


@functools.partial(jax.jit, static_argnames=("block_bytes", "allow_fused"))
def _fit_forward(x3, *, block_bytes=_DEFAULT_BLOCK_BYTES, allow_fused=True):
    """fit() + normalise: per-channel batch mean / unbiased var and standardised output."""
    B, C, HW = x3.shape
    itemsize = x3.dtype.itemsize
    if allow_fused and B * C * HW * max(itemsize, 4) <= _FUSED_MAX_BYTES:
        return _fused_fit_norm_pallas(x3)

    R = B * C
    x2 = x3.reshape(R, HW)
    rblk, rows_p, cblk, cols_p = _pick_blocks(R, HW, itemsize, block_bytes)
    x2p = _pad2d(x2, rows_p, cols_p)
    mean_r, m2_r = _row_stats_pallas(x2p, rblk, rows_p, cblk, cols_p, HW)
    mean_c, m2_c = _combine_row_partials(mean_r, m2_r, B, C, HW)
    var_c = m2_c / (B * HW - 1.0)
    out3 = _normalize_with(x2p, mean_c, var_c, rblk, cblk, B, C, HW, R)
    return out3, mean_c, var_c


@functools.partial(jax.jit, static_argnames=("block_bytes",))
def _batch_stats(x3, *, block_bytes=_DEFAULT_BLOCK_BYTES):
    """Per-channel batch mean and sum of squared deviations (over B*H*W elements)."""
    B, C, HW = x3.shape
    R = B * C
    x2 = x3.reshape(R, HW)
    rblk, rows_p, cblk, cols_p = _pick_blocks(R, HW, x3.dtype.itemsize, block_bytes)
    x2p = _pad2d(x2, rows_p, cols_p)
    mean_r, m2_r = _row_stats_pallas(x2p, rblk, rows_p, cblk, cols_p, HW)
    return _combine_row_partials(mean_r, m2_r, B, C, HW)


@functools.partial(jax.jit, static_argnames=("block_bytes",))
def _normalize_forward(x3, mean_c, var_c, *, block_bytes=_DEFAULT_BLOCK_BYTES):
    """Standardise with given per-channel stats: (x - mean) / (sqrt(var) + 1e-8)."""
    B, C, HW = x3.shape
    R = B * C
    x2 = x3.reshape(R, HW)
    rblk, rows_p, cblk, cols_p = _pick_blocks(R, HW, x3.dtype.itemsize, block_bytes)
    x2p = _pad2d(x2, rows_p, cols_p)
    return _normalize_with(x2p, mean_c, var_c, rblk, cblk, B, C, HW, R)


# ---------------------------------------------------------------------------
# Module-level wrapper (mirrors IterativeNormLayer state & forward)
# ---------------------------------------------------------------------------
class PallasIterativeNormLayer:
    """Pallas TPU port specialised to inpt_dim = (C, H, W), dims = (1, 2)."""

    def __init__(self, inpt_dim, dims=(1, 2), means=None, vars=None, n=0,
                 max_n=100000, ema_sync=0.0,
                 block_bytes=_DEFAULT_BLOCK_BYTES, allow_fused=True):
        dims = (dims,) if isinstance(dims, int) else tuple(dims)
        ndim = len(inpt_dim)
        dims = tuple(sorted(d if d >= 0 else ndim + d for d in dims))
        if dims != (1, 2):
            raise NotImplementedError("this Pallas port is specialised to dims=(1, 2)")
        if (means is None) ^ (vars is None):
            raise ValueError("Only one of 'means' and 'vars' is defined.")
        C = int(inpt_dim[0])
        self.inpt_dim = tuple(int(d) for d in inpt_dim)
        self.stat_dim = (1, C, 1, 1)
        self.max_n = int(max_n)
        self.ema_sync = float(ema_sync)
        self.do_ema = self.ema_sync > 0
        self._block_bytes = int(block_bytes)
        self._allow_fused = bool(allow_fused)
        self.means = (jnp.zeros(self.stat_dim, jnp.float32) if means is None
                      else jnp.asarray(means, jnp.float32).reshape(self.stat_dim))
        self.vars = (jnp.ones(self.stat_dim, jnp.float32) if vars is None
                     else jnp.asarray(vars, jnp.float32).reshape(self.stat_dim))
        # TODO(synk): torch keeps m2 in float64; TPU default is float32.
        self.m2 = (jnp.ones(self.stat_dim, jnp.float32) if vars is None
                   else jnp.asarray(vars, jnp.float32).reshape(self.stat_dim))
        self.n = int(n)
        self.frozen = (means is not None and vars is not None) or self.n > self.max_n

    # --- running-stat updates (tiny per-channel math in plain JAX) -----------
    def _welford_update(self, x3, B, HW):
        mean_b, m2_b = _batch_stats(x3, block_bytes=self._block_bytes)
        K = B * HW
        n_new = self.n + B
        means_old = self.means.reshape(-1)
        means_new = means_old + (mean_b - means_old) * (B / n_new)
        # mean over elements of (x - mu_old)(x - mu_new), via batch mean / M2:
        cross = m2_b / K + (mean_b - means_old) * (mean_b - means_new)
        m2_new = self.m2.reshape(-1) + cross * B
        self.means = means_new.reshape(self.stat_dim)
        self.m2 = m2_new.reshape(self.stat_dim)
        self.vars = (m2_new / n_new).reshape(self.stat_dim)
        self.n = n_new

    def _ema_update(self, x3, B, HW):
        mean_b, m2_b = _batch_stats(x3, block_bytes=self._block_bytes)
        K = B * HW
        s = self.ema_sync
        self.n = self.n + B
        means_new = s * self.means.reshape(-1) + (1.0 - s) * mean_b
        nv = m2_b / K + (mean_b - means_new) ** 2
        self.vars = (s * self.vars.reshape(-1) + (1.0 - s) * nv).reshape(self.stat_dim)
        self.means = means_new.reshape(self.stat_dim)

    # --- forward --------------------------------------------------------------
    def __call__(self, x, mask=None, training=True):
        if mask is not None:
            # TODO(synk): boolean-mask gather/scatter path not implemented.
            raise NotImplementedError("masked inputs are not supported")
        B, C, H, W = x.shape
        assert (C, H, W) == self.inpt_dim
        HW = H * W
        x3 = x.reshape(B, C, HW)

        if training:
            self.frozen = self.n >= self.max_n
            if not self.frozen:
                if self.n == 0:
                    # fit(): population stats of this batch + fused normalisation
                    out3, mean_c, var_c = _fit_forward(
                        x3, block_bytes=self._block_bytes,
                        allow_fused=self._allow_fused)
                    self.means = mean_c.reshape(self.stat_dim)
                    self.vars = var_c.reshape(self.stat_dim)
                    self.n = B
                    self.m2 = (var_c * self.n).reshape(self.stat_dim)
                    return out3.reshape(B, C, H, W)
                if self.do_ema:
                    self._ema_update(x3, B, HW)
                else:
                    self._welford_update(x3, B, HW)

        out3 = _normalize_forward(x3, self.means.reshape(-1), self.vars.reshape(-1),
                                  block_bytes=self._block_bytes)
        return out3.reshape(B, C, H, W)


# ---------------------------------------------------------------------------
if __name__ == "__main__":
    key = jax.random.PRNGKey(0)
    k1, k2, k3 = jax.random.split(key, 3)

    B, C, H, W = 2, 4, 16, 16
    x = 2.0 * jax.random.normal(k1, (B, C, H, W), jnp.float32) + 1.5

    def torch_fit_ref(xx):
        mean = jnp.mean(xx, axis=(0, 2, 3), keepdims=True)
        var = jnp.var(xx, axis=(0, 2, 3), ddof=1, keepdims=True)
        return (xx - mean) / (jnp.sqrt(var) + 1e-8), mean, var

    ref_out, ref_mean, ref_var = torch_fit_ref(x)

    # 1) training forward, n == 0 -> fit + normalise (fused single-pass kernel).
    layer = PallasIterativeNormLayer((C, H, W), dims=(1, 2))
    out = jax.block_until_ready(layer(x, training=True))
    assert out.shape == x.shape and out.dtype == x.dtype
    assert jnp.allclose(out, ref_out, rtol=1e-5, atol=1e-5), "fused fit output mismatch"
    assert jnp.allclose(layer.means.reshape(-1), ref_mean.reshape(-1), rtol=1e-5, atol=1e-5)
    assert jnp.allclose(layer.vars.reshape(-1), ref_var.reshape(-1), rtol=1e-5, atol=1e-5)
    assert layer.n == B

    # 2) eval / frozen path: normalise with the stored stats (tiled normalize kernel).
    out_eval = jax.block_until_ready(layer(x, training=False))
    assert jnp.allclose(out_eval, ref_out, rtol=1e-5, atol=1e-5), "eval path mismatch"

    # 3) forced multi-column-block tiled path (stats accumulation across column blocks).
    layer_t = PallasIterativeNormLayer((C, H, W), dims=(1, 2),
                                       block_bytes=4096, allow_fused=False)
    out_t = jax.block_until_ready(layer_t(x, training=True))
    assert jnp.allclose(out_t, ref_out, rtol=1e-5, atol=1e-5), "tiled fit output mismatch"
    assert jnp.allclose(layer_t.vars.reshape(-1), ref_var.reshape(-1), rtol=1e-5, atol=1e-5)

    # 3b) multi-row-block + multi-column-block path.
    x4 = jax.random.normal(k2, (4, C, H, W), jnp.float32) * 0.5 - 2.0
    ref_out4, _, _ = torch_fit_ref(x4)
    layer_t4 = PallasIterativeNormLayer((C, H, W), dims=(1, 2),
                                        block_bytes=4096, allow_fused=False)
    out_t4 = jax.block_until_ready(layer_t4(x4, training=True))
    assert jnp.allclose(out_t4, ref_out4, rtol=1e-5, atol=1e-5), "multi-row-block mismatch"

    # 4) ragged spatial extent (H*W not a multiple of 128) -> padded + masked tail block.
    Hr = Wr = 13
    xr = jax.random.normal(k3, (B, C, Hr, Wr), jnp.float32) * 3.0 + 0.7
    ref_outr, _, ref_varr = torch_fit_ref(xr)
    layer_r = PallasIterativeNormLayer((C, Hr, Wr), dims=(1, 2),
                                       block_bytes=4096, allow_fused=False)
    out_r = jax.block_until_ready(layer_r(xr, training=True))
    assert jnp.allclose(out_r, ref_outr, rtol=1e-5, atol=1e-5), "ragged path mismatch"
    assert jnp.allclose(layer_r.vars.reshape(-1), ref_varr.reshape(-1), rtol=1e-5, atol=1e-5)

    # 5) n > 0 Welford running update (second training batch).
    x2b = jax.random.normal(k2, (B, C, H, W), jnp.float32) * 1.7 - 0.3
    layer_w = PallasIterativeNormLayer((C, H, W), dims=(1, 2))
    _ = layer_w(x, training=True)                     # fit on the first batch
    out_w = jax.block_until_ready(layer_w(x2b, training=True))
    means0, vars0 = ref_mean, ref_var
    m20 = vars0 * B
    n_new = B + B
    d = x2b - means0
    means1 = means0 + jnp.mean(d / n_new, axis=(0, 2, 3), keepdims=True) * B
    d2 = x2b - means1
    m21 = m20 + jnp.mean(d * d2, axis=(0, 2, 3), keepdims=True) * B
    vars1 = m21 / n_new
    ref_out_w = (x2b - means1) / (jnp.sqrt(vars1) + 1e-8)
    assert jnp.allclose(layer_w.means.reshape(-1), means1.reshape(-1), rtol=1e-4, atol=1e-5)
    assert jnp.allclose(layer_w.vars.reshape(-1), vars1.reshape(-1), rtol=1e-4, atol=1e-5)
    assert jnp.allclose(out_w, ref_out_w, rtol=1e-4, atol=1e-4), "welford output mismatch"
    assert layer_w.n == n_new

    # 6) n > 0 EMA running update.
    sync = 0.25
    layer_e = PallasIterativeNormLayer((C, H, W), dims=(1, 2), ema_sync=sync)
    _ = layer_e(x, training=True)
    out_e = jax.block_until_ready(layer_e(x2b, training=True))
    nm = jnp.mean(x2b, axis=(0, 2, 3), keepdims=True)
    means_e = sync * ref_mean + (1 - sync) * nm
    nv = jnp.mean((x2b - means_e) ** 2, axis=(0, 2, 3), keepdims=True)
    vars_e = sync * ref_var + (1 - sync) * nv
    ref_out_e = (x2b - means_e) / (jnp.sqrt(vars_e) + 1e-8)
    assert jnp.allclose(layer_e.means.reshape(-1), means_e.reshape(-1), rtol=1e-4, atol=1e-5)
    assert jnp.allclose(layer_e.vars.reshape(-1), vars_e.reshape(-1), rtol=1e-4, atol=1e-5)
    assert jnp.allclose(out_e, ref_out_e, rtol=1e-4, atol=1e-4), "ema output mismatch"
    assert layer_e.n == 2 * B

    print("KERNEL_OK")
</pallas_src>

<mosaic_0001>
module attributes {stable_mosaic.version = 11 : i64} {
  func.func @kernel(%arg0: i32, %arg1: memref<2x4x256xf32, #tpu.memory_space<vmem>>, %arg2: memref<2x4x256xf32, #tpu.memory_space<vmem>>, %arg3: memref<1x4x1xf32, #tpu.memory_space<vmem>>, %arg4: memref<1x4x1xf32, #tpu.memory_space<vmem>>) attributes {dimension_semantics = [#tpu.dimension_semantics<arbitrary>], iteration_bounds = array<i64: 1>, scalar_prefetch = 0 : i64, scratch_operands = 0 : i64, tpu.core_type = #tpu.core_type<tc>, window_params = [{pipeline_mode = #tpu.pipeline_mode<synchronous>, transform_indices = @transform_0, window_bounds = array<i64: 2, 4, 256>}, {pipeline_mode = #tpu.pipeline_mode<synchronous>, transform_indices = @transform_1, window_bounds = array<i64: 2, 4, 256>}, {pipeline_mode = #tpu.pipeline_mode<synchronous>, transform_indices = @transform_2, window_bounds = array<i64: 1, 4, 1>}, {pipeline_mode = #tpu.pipeline_mode<synchronous>, transform_indices = @transform_3, window_bounds = array<i64: 1, 4, 1>}]} {
    %c0 = arith.constant 0 : index
    %c0_0 = arith.constant 0 : index
    %c0_1 = arith.constant 0 : index
    %0 = vector.load %arg1[%c0, %c0_0, %c0_1] : memref<2x4x256xf32, #tpu.memory_space<vmem>>, vector<2x4x256xf32>
    %cst = arith.constant dense<0.000000e+00> : vector<2x4xf32>
    %1 = vector.multi_reduction <add>, %0, %cst [2] : vector<2x4x256xf32> to vector<2x4xf32>
    %2 = vector.shape_cast %1 : vector<2x4xf32> to vector<2x4x1xf32>
    %cst_2 = arith.constant dense<0.000000e+00> : vector<4x1xf32>
    %3 = vector.multi_reduction <add>, %2, %cst_2 [0] : vector<2x4x1xf32> to vector<4x1xf32>
    %4 = vector.shape_cast %3 : vector<4x1xf32> to vector<1x4x1xf32>
    %cst_3 = arith.constant 0.001953125 : f32
    %5 = vector.broadcast %cst_3 : f32 to vector<1x4x1xf32>
    %6 = arith.mulf %4, %5 : vector<1x4x1xf32>
    %7 = vector.broadcast %6 : vector<1x4x1xf32> to vector<2x4x256xf32>
    %8 = arith.subf %0, %7 : vector<2x4x256xf32>
    %9 = arith.mulf %8, %8 : vector<2x4x256xf32>
    %cst_4 = arith.constant dense<0.000000e+00> : vector<2x4xf32>
    %10 = vector.multi_reduction <add>, %9, %cst_4 [2] : vector<2x4x256xf32> to vector<2x4xf32>
    %11 = vector.shape_cast %10 : vector<2x4xf32> to vector<2x4x1xf32>
    %cst_5 = arith.constant dense<0.000000e+00> : vector<4x1xf32>
    %12 = vector.multi_reduction <add>, %11, %cst_5 [0] : vector<2x4x1xf32> to vector<4x1xf32>
    %13 = vector.shape_cast %12 : vector<4x1xf32> to vector<1x4x1xf32>
    %cst_6 = arith.constant 5.110000e+02 : f32
    %14 = vector.broadcast %cst_6 : f32 to vector<1x4x1xf32>
    %15 = arith.divf %13, %14 : vector<1x4x1xf32>
    %16 = math.sqrt %15 : vector<1x4x1xf32>
    %cst_7 = arith.constant 9.99999993E-9 : f32
    %17 = vector.broadcast %cst_7 : f32 to vector<1x4x1xf32>
    %18 = arith.addf %16, %17 : vector<1x4x1xf32>
    %cst_8 = arith.constant 1.000000e+00 : f32
    %19 = vector.broadcast %cst_8 : f32 to vector<1x4x1xf32>
    %20 = arith.divf %19, %18 : vector<1x4x1xf32>
    %21 = vector.broadcast %20 : vector<1x4x1xf32> to vector<2x4x256xf32>
    %22 = arith.mulf %8, %21 : vector<2x4x256xf32>
    %c0_9 = arith.constant 0 : index
    %c0_10 = arith.constant 0 : index
    %c0_11 = arith.constant 0 : index
    %23 = vector.load %arg2[%c0_9, %c0_10, %c0_11] : memref<2x4x256xf32, #tpu.memory_space<vmem>>, vector<2x4x256xf32>
    tpu.vector_store %arg2[%c0_9, %c0_10, %c0_11], %22 {strides = array<i32>} : memref<2x4x256xf32, #tpu.memory_space<vmem>>, vector<2x4x256xf32>,
    %c0_12 = arith.constant 0 : index
    %c0_13 = arith.constant 0 : index
    %c0_14 = arith.constant 0 : index
    %24 = vector.load %arg3[%c0_12, %c0_13, %c0_14] : memref<1x4x1xf32, #tpu.memory_space<vmem>>, vector<1x4x1xf32>
    tpu.vector_store %arg3[%c0_12, %c0_13, %c0_14], %6 {strides = array<i32>} : memref<1x4x1xf32, #tpu.memory_space<vmem>>, vector<1x4x1xf32>,
    %c0_15 = arith.constant 0 : index
    %c0_16 = arith.constant 0 : index
    %c0_17 = arith.constant 0 : index
    %25 = vector.load %arg4[%c0_15, %c0_16, %c0_17] : memref<1x4x1xf32, #tpu.memory_space<vmem>>, vector<1x4x1xf32>
    tpu.vector_store %arg4[%c0_15, %c0_16, %c0_17], %15 {strides = array<i32>} : memref<1x4x1xf32, #tpu.memory_space<vmem>>, vector<1x4x1xf32>,
    return
  }
  func.func @transform_0(%arg0: i32) -> (i32, i32, i32) {
    %c0_i32 = arith.constant 0 : i32
    %c0_i32_0 = arith.constant 0 : i32
    %c0_i32_1 = arith.constant 0 : i32
    %c0_i32_2 = arith.constant 0 : i32
    return %c0_i32, %c0_i32_0, %c0_i32_1 : i32, i32, i32
  }
  func.func @transform_1(%arg0: i32) -> (i32, i32, i32) {
    %c0_i32 = arith.constant 0 : i32
    %c0_i32_0 = arith.constant 0 : i32
    %c0_i32_1 = arith.constant 0 : i32
    %c0_i32_2 = arith.constant 0 : i32
    return %c0_i32, %c0_i32_0, %c0_i32_1 : i32, i32, i32
  }
  func.func @transform_2(%arg0: i32) -> (i32, i32, i32) {
    %c0_i32 = arith.constant 0 : i32
    %c0_i32_0 = arith.constant 0 : i32
    %c0_i32_1 = arith.constant 0 : i32
    %c0_i32_2 = arith.constant 0 : i32
    return %c0_i32, %c0_i32_0, %c0_i32_1 : i32, i32, i32
  }
  func.func @transform_3(%arg0: i32) -> (i32, i32, i32) {
    %c0_i32 = arith.constant 0 : i32
    %c0_i32_0 = arith.constant 0 : i32
    %c0_i32_1 = arith.constant 0 : i32
    %c0_i32_2 = arith.constant 0 : i32
    return %c0_i32, %c0_i32_0, %c0_i32_1 : i32, i32, i32
  }
}

</mosaic_0001>

<llo_original>
// kernel: _fit_forward.1
$region0: #{_fit_forward.1}
  #allocation0 [shape = 'u32[]', space=smem, size = 0x4, offset = 0x4, fixed_abs, tag = 'smem constant byte address 0x4 - core index']
  #allocation1 [shape = 'u32[72,128]{1,0:T(1,128)}', space=vmem, size = 0x9000, scoped, tag = 'internal scratch']
  %s0 = inlined_call_operand.hbm [shape: f32[2,4,256], index: 0, kind: input, shape index: {}]
  %s1 = inlined_call_operand.hbm [shape: f32[2,4,256], index: 1, kind: output, shape index: {0}]
  %s2 = inlined_call_operand.vmem [shape: f32[1,4,1], index: 2, kind: output, shape index: {1}]
  %s3 = inlined_call_operand.vmem [shape: f32[1,4,1], index: 3, kind: output, shape index: {2}]
  %4 = xla_tuple %s1, %s2, %s3
  %s5 = sld [smem:[#allocation0]]
  $region34: #{_fit_forward.1} parent=0
    _
  %s7 = ssub.s32 1, %s5
  %s8 = scalar_select 0, %s7, %s5
  $region1: #{_fit_forward.1} parent=0
    #allocation2 [shape = 'u8[8192]{0}', space=vmem, size = 0x2000, scoped, tag = 'input window, operand 0, single buffered']
    #allocation3 [shape = 's32[1]{0}', space=sflag, size = 0x4, scoped, tag = 'scoped memory for _fit_forward.1']
    #allocation4 [shape = 's32[1]{0}', space=sflag, size = 0x4, scoped, tag = 'scoped memory for _fit_forward.1']
    #allocation5 [shape = 'u8[8192]{0}', space=vmem, size = 0x2000, scoped, tag = 'output window, operand 0, single buffered']
    %9 = vsyncpa [#allocation3], 0
    %10 = vsyncpa [#allocation4], 0
    // Predicated region
    $region2: #{_fit_forward.1} parent=1 // pred_check
      _
    $region3: #{_fit_forward.1} parent=1 // pred_check_branch
      %12 = sbr.rel (0) target = $region5
    $region4: #{_fit_forward.1} parent=1 // pred_region
      %14 = vsyncadd [#allocation3], 0
      %s15 = sshll.u32 %s0, 4
      %s16 = int_to_ptr.hbm [resolvable:$true] %s15
      %s17 = sshll.u32 [#allocation2], 4
      %s18 = int_to_ptr.vmem [resolvable:$true] %s17
      %23 = dma.hbm_to_vmem [thread:$0]  %s16, 256, %s18, [#allocation3], 128, 128, 8
    $region5: #{_fit_forward.1} parent=1 // pred_fallthru
      _
    // Predicated region
    $region6: #{_fit_forward.1} parent=1 // pred_check
      _
    $region7: #{_fit_forward.1} parent=1 // pred_check_branch
      %25 = sbr.rel (0) target = $region9
    $region8: #{_fit_forward.1} parent=1 // pred_region
      %27 = dma.done [#allocation3], 256
    $region9: #{_fit_forward.1} parent=1 // pred_fallthru
      _
    %v28 = vld [vmem:[#allocation2] sm:$0xff]
    %v29 = vld [vmem:[#allocation2 + $0x8] sm:$0xff]
    %32 = vst [vmem:[#allocation1] ss:$2 sm:$0xff] %v28
    %v33 = vld.sshfl [vmem:[#allocation1] sm:$0xff pattern:$0x75316420]
    %v34 = vld.sshfl [vmem:[#allocation1 + $0x8] sm:$0xff pattern:$0x75316420]
    %s35 = scalar_lea.vmem [#allocation1], 16
    %36 = vst [vmem:[%s35] ss:$2 sm:$0xff] %v29
    %v37 = vld.sshfl [vmem:[#allocation1 + $0x10] sm:$0xff pattern:$0x75316420]
    %v38 = vld.sshfl [vmem:[#allocation1 + $0x18] sm:$0xff pattern:$0x75316420]
    %vm43 = vcmask 1043456
    %v44 = vsel %vm43, %v33, 0.0
    %v45 = vsel %vm43, %v34, 0.0
    %v46 = vadd.f32 %v44, %v45
    %47 = vadd.xlane.f32.xlu0 %v46
    %v48 = vpop.xlane.xlu0 %47
    %v49 = vsel %vm43, %v37, 0.0
    %v50 = vsel %vm43, %v38, 0.0
    %v51 = vadd.f32 %v49, %v50
    %52 = vadd.xlane.f32.xlu0 %v51
    %v53 = vpop.xlane.xlu0 %52
    %v54 = vsel %vm43, %v48, 0.0
    %v55 = vsel %vm43, %v53, 0.0
    %v56 = vadd.f32 %v54, %v55
    %v57 = vmul.f32 %v56, 0.001953125
    %v60 = vunpack.c.l.s4 839922192
    %v61 = vunpack.c.0.s8 %v60
    %v62 = vperm.slane %v57, %v61
    %v64 = vsub.f32 %v28, %v62
    %v65 = vsub.f32 %v29, %v62
    %v66 = vmul.f32 %v64, %v64
    %v67 = vmul.f32 %v65, %v65
    %70 = vst [vmem:[#allocation1] ss:$2 sm:$0xff] %v66
    %v71 = vld.sshfl [vmem:[#allocation1] sm:$0xff pattern:$0x75316420]
    %v72 = vld.sshfl [vmem:[#allocation1 + $0x8] sm:$0xff pattern:$0x75316420]
    %s73 = scalar_lea.vmem [#allocation1], 16
    %74 = vst [vmem:[%s73] ss:$2 sm:$0xff] %v67
    %v75 = vld.sshfl [vmem:[#allocation1 + $0x10] sm:$0xff pattern:$0x75316420]
    %v76 = vld.sshfl [vmem:[#allocation1 + $0x18] sm:$0xff pattern:$0x75316420]
    %v81 = vsel %vm43, %v71, 0.0
    %v82 = vsel %vm43, %v72, 0.0
    %v83 = vadd.f32 %v81, %v82
    %84 = vadd.xlane.f32.xlu0 %v83
    %v85 = vpop.xlane.xlu0 %84
    %v86 = vsel %vm43, %v75, 0.0
    %v87 = vsel %vm43, %v76, 0.0
    %v88 = vadd.f32 %v86, %v87
    %89 = vadd.xlane.f32.xlu0 %v88
    %v90 = vpop.xlane.xlu0 %89
    %v91 = vsel %vm43, %v85, 0.0
    %v92 = vsel %vm43, %v90, 0.0
    %v93 = vadd.f32 %v91, %v92
    %v94 = vrcp.pop 511.0
    %v95 = vmul.f32 511.0, %v94
    %v96 = vsub.f32 1.0, %v95
    %v97 = vmul.f32 %v94, %v96
    %v98 = vadd.f32 %v94, %v97
    %vm99 = vweird.f32 %v94
    %v100 = vsel %vm99, %v94, %v98
    %v101 = vmul.f32 %v93, %v100
    %v102 = vrsqrt.pop %v101
    %v103 = vmul.f32 %v102, %v101
    %v104 = vmul.f32 %v103, %v102
    %v105 = vmul.f32 0.5, %v104
    %v106 = vsub.f32 1.5, %v105
    %v107 = vmul.f32 %v102, %v106
    %v108 = vmul.f32 %v101, %v107
    %vm109 = vcmp.eq.f32.partialorder %v101, inf
    %v110 = vsel %vm109, %v101, %v108
    %vm111 = vcmp.eq.f32.partialorder %v101, 0.0
    %v112 = vand.u32 %v101, 2147483648
    %v113 = vsel %vm111, %v112, %v110
    %v114 = vadd.f32 %v113, 1e-08
    %v115 = vrcp.pop %v114
    %v116 = vmul.f32 %v114, %v115
    %v117 = vsub.f32 1.0, %v116
    %v118 = vmul.f32 %v115, %v117
    %v119 = vadd.f32 %v115, %v118
    %vm120 = vweird.f32 %v114
    %vm121 = vweird.f32 %v115
    %vm122 = vmor %vm120, %vm121
    %v123 = vsel %vm122, %v115, %v119
    %v124 = vand.u32 2147483647, %v114
    %vm125 = vcmp.eq.f32.partialorder %v124, 8.507059e+37
    %v126 = vand.u32 %v114, 2147483648
    %v127 = vor.u32 1.1754944e-38, %v126
    %v128 = vsel %vm125, %v127, %v123
    %v129 = vmul.f32 1.0, %v128
    %v132 = vunpack.c.l.s4 839922192
    %v133 = vunpack.c.0.s8 %v132
    %v134 = vperm.slane %v129, %v133
    %v136 = vmul.f32 %v64, %v134
    %v137 = vmul.f32 %v65, %v134
    %138 = vst [vmem:[#allocation5] sm:$0xff] %v136
    %139 = vst [vmem:[#allocation5 + $0x8] sm:$0xff] %v137
    %vm140 = vcmask 3072
    %141 = vst.msk [vmem:[%s2] sm:$0xf] %vm140, %v57
    %142 = vst.msk [vmem:[%s3] sm:$0xf] %vm140, %v101
    // Predicated region
    $region10: #{_fit_forward.1} parent=1 // pred_check
      _
    $region11: #{_fit_forward.1} parent=1 // pred_check_branch
      %144 = sbr.rel (0) target = $region13
    $region12: #{_fit_forward.1} parent=1 // pred_region
      %146 = vsyncadd [#allocation4], 0
      %s147 = sshll.u32 [#allocation5], 4
      %s148 = int_to_ptr.vmem [resolvable:$true] %s147
      %s149 = sshll.u32 %s1, 4
      %s150 = int_to_ptr.hbm [resolvable:$true] %s149
      %155 = dma.vmem_to_hbm [thread:$0]  %s148, 256, %s150, [#allocation4], 128, 128, 8
    $region13: #{_fit_forward.1} parent=1 // pred_fallthru
      _
    // Predicated region
    $region14: #{_fit_forward.1} parent=1 // pred_check
      _
    $region15: #{_fit_forward.1} parent=1 // pred_check_branch
      %157 = sbr.rel (0) target = $region17
    $region16: #{_fit_forward.1} parent=1 // pred_region
      _
    $region17: #{_fit_forward.1} parent=1 // pred_fallthru
      _
    // Predicated region
    $region18: #{_fit_forward.1} parent=1 // pred_check
      _
    $region19: #{_fit_forward.1} parent=1 // pred_check_branch
      %159 = sbr.rel (0) target = $region21
    $region20: #{_fit_forward.1} parent=1 // pred_region
      _
    $region21: #{_fit_forward.1} parent=1 // pred_fallthru
      _
    // Predicated region
    $region22: #{_fit_forward.1} parent=1 // pred_check
      _
    $region23: #{_fit_forward.1} parent=1 // pred_check_branch
      %161 = sbr.rel (0) target = $region25
    $region24: #{_fit_forward.1} parent=1 // pred_region
      %163 = dma.done [#allocation4], 256
    $region25: #{_fit_forward.1} parent=1 // pred_fallthru
      _
    // Predicated region
    $region26: #{_fit_forward.1} parent=1 // pred_check
      _
    $region27: #{_fit_forward.1} parent=1 // pred_check_branch
      %165 = sbr.rel (0) target = $region29
    $region28: #{_fit_forward.1} parent=1 // pred_region
      _
    $region29: #{_fit_forward.1} parent=1 // pred_fallthru
      _
    // Predicated region
    $region30: #{_fit_forward.1} parent=1 // pred_check
      _
    $region31: #{_fit_forward.1} parent=1 // pred_check_branch
      %167 = sbr.rel (0) target = $region33
    $region32: #{_fit_forward.1} parent=1 // pred_region
      _
    $region33: #{_fit_forward.1} parent=1 // pred_fallthru
      _
    %168 = vsyncpa [#allocation3], 1
    %169 = vsyncpa [#allocation4], 1

</llo_original>
